<compile_context>
chip_gen: v6e
topology: v6e:2x2x1
jax: 0.10.0
libtpu: 0.0.40
codegen_flags: <defaults>
</compile_context>

<pallas_src>
import jax
import jax.numpy as jnp
from jax.experimental import pallas as pl
from jax.experimental.pallas import tpu as pltpu


def _round_up(x, m):
    return ((x + m - 1) // m) * m


def _round_down(x, m):
    return (x // m) * m


def _tpu_vmem_capacity_bytes():
    """Best-effort physical VMEM capacity; conservative fallback (v7x per-core)."""
    try:
        cap = getattr(pltpu.get_tpu_info(), "vmem_capacity_bytes", None)
        if cap:
            return int(cap)
    except Exception:
        pass
    return 64 << 20


def _vmem_limits():
    cap = _tpu_vmem_capacity_bytes()
    vmem_limit = (cap * 3) // 4      # leave headroom for compiler-internal scratch
    block_budget = vmem_limit // 2   # budget for pipelined blocks + temporaries
    return int(vmem_limit), int(block_budget)


# ----------------------------------------------------------------------------
# Kernel 1: fused Q/K/V SPD bilinear transform via the Kronecker identity
#   vec_row(W X W^T) = (W ⊗ W) vec_row(X)
#   out = X_flat @ [kron(Wq,Wq); kron(Wk,Wk); kron(Wv,Wv)]^T       (cols padded)
# One lane-dense MXU matmul per block of rows; x is DMA'd from HBM once.
# ----------------------------------------------------------------------------
def _qkv_kernel(x_ref, w_ref, o_ref):
    o_ref[...] = jnp.dot(x_ref[...], w_ref[...],
                         preferred_element_type=jnp.float32)


def qkv_transform(x_flat, w_t, out_cols=None):
    """x_flat: (N, d_in^2) @ w_t: (d_in^2, K) -> (N, out_cols) f32."""
    n, din2 = x_flat.shape
    kout = w_t.shape[1]
    kout_pad = _round_up(kout, 128)
    if kout_pad != kout:
        # Lane-dense MXU N-dim / unmasked output stores; zero cols sliced below.
        w_t = jnp.pad(w_t, ((0, 0), (0, kout_pad - kout)))

    vmem_limit, budget = _vmem_limits()
    x_bytes = jnp.dtype(x_flat.dtype).itemsize
    w_bytes = jnp.dtype(w_t.dtype).itemsize
    weight_bytes = 2 * din2 * kout_pad * w_bytes       # worst case: 2 weight buffers
    row_bytes = 2 * (din2 * x_bytes + kout_pad * 4)    # dbl-buffered x + out per row
    tb_cap = max(8, _round_down(max(budget - weight_bytes, 0) // row_bytes, 8))
    tb = min(_round_up(n, 8), tb_cap)                  # single big block when it fits

    n_pad = _round_up(n, tb)
    if n_pad != n:
        x_flat = jnp.pad(x_flat, ((0, n_pad - n), (0, 0)))

    cost = pl.CostEstimate(
        flops=2 * n_pad * din2 * kout_pad,
        transcendentals=0,
        bytes_accessed=n_pad * din2 * x_bytes + din2 * kout_pad * w_bytes
        + n_pad * kout_pad * 4)

    def call(w_spec):
        return pl.pallas_call(
            _qkv_kernel,
            out_shape=jax.ShapeDtypeStruct((n_pad, kout_pad), jnp.float32),
            grid=(n_pad // tb,),
            in_specs=[pl.BlockSpec((tb, din2), lambda i: (i, 0)), w_spec],
            out_specs=pl.BlockSpec((tb, kout_pad), lambda i: (i, 0)),
            compiler_params=pltpu.CompilerParams(
                dimension_semantics=("parallel",),
                vmem_limit_bytes=vmem_limit),
            cost_estimate=cost,
        )(x_flat, w_t)

    try:
        # Grid-invariant weights: single-buffer them to halve their VMEM footprint.
        out = call(pl.BlockSpec((din2, kout_pad), lambda i: (0, 0),
                                pipeline_mode=pl.Buffered(1)))
    except Exception:
        out = call(pl.BlockSpec((din2, kout_pad), lambda i: (0, 0)))

    if out_cols is None:
        out_cols = kout
    return out[:n, :out_cols]


# ----------------------------------------------------------------------------
# Kernel 2: log-Euclidean distances + softmax attention + weighted log mean
#   energy[j, i] = || log Q_j - log K_i ||_F^2   (built directly in [query,key])
#   score        = 1 / (1 + log1p(energy))                 in (0, 1]
#   prob[j, :]   = softmax_i(score[j, :])   (== PyTorch softmax(dim=-2) + permute)
#   out_log[j]   = sum_i prob[j, i] * log V_i
# ----------------------------------------------------------------------------
def _stable_log1p(x):
    # log1p for x >= 0: log(u) * x / (u - 1) correction; the divide goes to the
    # EUP reciprocal to keep the VALU slots free.
    u = 1.0 + x
    d = jnp.where(u > 1.0, u - 1.0, 1.0)
    corr = x * pl.reciprocal(d, approx=True)
    return jnp.where(u > 1.0, jnp.log(u) * corr, x)


def _attention_kernel(q_ref, k_ref, v_ref, o_ref):
    q = q_ref[...]                                     # (bb, m, ddp) bf16/f32
    k = k_ref[...]
    v = v_ref[...]
    qf = q.astype(jnp.float32)
    kf = k.astype(jnp.float32)

    # Squared log-Euclidean distance in [query, key] order; f32 accumulation.
    qn = jnp.sum(qf * qf, axis=-1, keepdims=True)      # (bb, m, 1)
    kn = jnp.sum(kf * kf, axis=-1)[:, None, :]         # (bb, 1, m)
    cross = jnp.einsum("bjd,bid->bji", q, k,
                       preferred_element_type=jnp.float32)   # (bb, m, m)
    energy = jnp.maximum(qn + kn - 2.0 * cross, 0.0)

    # score in (0, 1] so exp(score) in (1, e] — no max-subtraction needed.
    score = pl.reciprocal(1.0 + _stable_log1p(energy), approx=True)
    e = jnp.exp(score)
    prob = e * pl.reciprocal(jnp.sum(e, axis=-1, keepdims=True), approx=True)

    o_ref[...] = jnp.einsum("bji,bid->bjd", prob.astype(v.dtype), v,
                            preferred_element_type=jnp.float32)


def attention_mean(logq, logk, logv, *, use_bf16=True):
    """Inputs (bs, m, dd) f32 flattened matrix logs -> (bs, m, dd) f32."""
    bs, m, dd = logq.shape
    dd_pad = _round_up(dd, 128)          # lane-dense loads & stores (dd=64 -> 128)
    in_dtype = jnp.bfloat16 if use_bf16 else jnp.float32

    def prep(a):
        if dd_pad != dd:
            a = jnp.pad(a, ((0, 0), (0, 0), (0, dd_pad - dd)))
        return a.astype(in_dtype)        # pre-cast in the wrapper: halves DMA bytes

    q, k, v = prep(logq), prep(logk), prep(logv)

    vmem_limit, budget = _vmem_limits()
    in_bytes = jnp.dtype(in_dtype).itemsize
    per_b = (2 * (3 * m * dd_pad * in_bytes + m * dd_pad * 4)   # dbl-buffered blocks
             + 6 * m * m * 4                                    # (m,m) f32 temporaries
             + 4 * m * dd_pad * 4)                              # in-kernel f32 casts
    bb = max(1, min(bs, budget // max(per_b, 1)))               # grow bb aggressively
    bs_pad = _round_up(bs, bb)                                  # pad, don't shrink bb
    if bs_pad != bs:
        padb = lambda a: jnp.pad(a, ((0, bs_pad - bs), (0, 0), (0, 0)))
        q, k, v = padb(q), padb(k), padb(v)

    cost = pl.CostEstimate(
        flops=int(bs_pad * (4 * m * m * dd_pad + 10 * m * m)),
        transcendentals=int(bs_pad * 4 * m * m),
        bytes_accessed=int(bs_pad * m * dd_pad * (3 * in_bytes + 4)))

    # TODO(synk): for very large m, add a KV-block grid axis ("arbitrary") with
    # flash-style online softmax so the (m, m) tiles never sit fully in VMEM
    # (matters first on v7x's 64 MiB). For tiny m, a VPU broadcast-subtract
    # energy path could also skip the under-filled MXU matmul.
    out = pl.pallas_call(
        _attention_kernel,
        out_shape=jax.ShapeDtypeStruct((bs_pad, m, dd_pad), jnp.float32),
        grid=(bs_pad // bb,),
        in_specs=[pl.BlockSpec((bb, m, dd_pad), lambda b: (b, 0, 0))] * 3,
        out_specs=pl.BlockSpec((bb, m, dd_pad), lambda b: (b, 0, 0)),
        compiler_params=pltpu.CompilerParams(
            dimension_semantics=("parallel",),
            vmem_limit_bytes=vmem_limit),
        cost_estimate=cost,
    )(q, k, v)
    return out[:bs, :, :dd]


# ----------------------------------------------------------------------------
# Symmetric matrix log / exp — plain JAX glue.
# TODO(synk): eigh/SVD has no Pallas TPU equivalent; done with XLA eigh.
# ----------------------------------------------------------------------------
def sym_log(s, eps=1e-6):
    s = 0.5 * (s + jnp.swapaxes(s, -1, -2))          # symmetrize before eigh
    w, u = jnp.linalg.eigh(s)
    w = jnp.maximum(w, eps)                          # guard against fp-negative eigs
    return jnp.einsum("...ik,...k,...jk->...ij", u, jnp.log(w), u)


def sym_exp(s):
    s = 0.5 * (s + jnp.swapaxes(s, -1, -2))
    w, u = jnp.linalg.eigh(s)
    return jnp.einsum("...ik,...k,...jk->...ij", u, jnp.exp(w), u)


def _orthogonal(key, rows, cols):
    """Deterministic semi-orthogonal matrix with orthonormal rows (rows<=cols)."""
    n = max(rows, cols)
    a = jax.random.normal(key, (n, n), jnp.float32)
    q, _ = jnp.linalg.qr(a)
    return q[:rows, :cols]


# ----------------------------------------------------------------------------
# AttentionManifold forward
# ----------------------------------------------------------------------------
class AttentionManifoldPallas:
    def __init__(self, in_embed_size, out_embed_size, key,
                 use_bf16_attention=True, use_bf16_qkv=False):
        self.d_in = in_embed_size
        self.d_out = out_embed_size
        self.use_bf16_attention = use_bf16_attention
        kq, kk, kv = jax.random.split(key, 3)
        # SPDTransform weights: (d_out, d_in), orthonormal rows (Stiefel init).
        self.w_q = _orthogonal(kq, out_embed_size, in_embed_size)
        self.w_k = _orthogonal(kk, out_embed_size, in_embed_size)
        self.w_v = _orthogonal(kv, out_embed_size, in_embed_size)
        # Precompute stacked kron(W, W) for the fused bilinear kernel, padded to
        # a lane-dense column count (multiple of 128).
        kron = lambda w: jnp.kron(w, w)                             # (d_out^2, d_in^2)
        w_stack = jnp.concatenate(
            [kron(self.w_q), kron(self.w_k), kron(self.w_v)], axis=0).T
        self.kout = 3 * out_embed_size * out_embed_size
        kout_pad = _round_up(self.kout, 128)
        if kout_pad != self.kout:
            w_stack = jnp.pad(w_stack, ((0, 0), (0, kout_pad - self.kout)))
        # Keep the bilinear map in f32 by default so Q/K/V stay strictly SPD;
        # bf16 is optional (symmetrize + eigenvalue clamp in sym_log guard it).
        self.qkv_dtype = jnp.bfloat16 if use_bf16_qkv else jnp.float32
        self.w_qkv_t = w_stack.astype(self.qkv_dtype)

    def __call__(self, x, shape=None):
        if x.ndim == 3 and shape is not None:
            x = x.reshape(shape[0], shape[1], self.d_in, self.d_in)
        x = x.astype(jnp.float32)
        bs, m = x.shape[0], x.shape[1]
        n = bs * m
        dd = self.d_out * self.d_out
        xf = x.reshape(n, self.d_in * self.d_in).astype(self.qkv_dtype)

        # Fused Q/K/V SPD bilinear transforms (Pallas kernel 1)
        qkv_flat = qkv_transform(xf, self.w_qkv_t, out_cols=self.kout)  # (n, 3*dd)
        qkv = qkv_flat.reshape(n, 3, self.d_out, self.d_out)  # [:,0]=Q [:,1]=K [:,2]=V

        # matrix logs (single batched eigh, JAX glue), flattened to (bs, m, dd)
        log_qkv = sym_log(qkv).reshape(bs, m, 3, dd)
        logq = log_qkv[:, :, 0, :]
        logk = log_qkv[:, :, 1, :]
        logv = log_qkv[:, :, 2, :]

        # distances + softmax attention + weighted log mean (Pallas kernel 2)
        out_log = attention_mean(logq, logk, logv, use_bf16=self.use_bf16_attention)
        out_log = out_log.reshape(bs, m, self.d_out, self.d_out)

        # matrix exp back to the SPD manifold (JAX glue)
        output = sym_exp(out_log)

        out_shape = [bs, m, -1]
        output = output.reshape(-1, self.d_out, self.d_out)
        return output, out_shape


# Pure-JAX reference of the full forward (same math, no Pallas) for validation.
def _reference_forward(x, w_q, w_k, w_v):
    bs, m, d_in, _ = x.shape
    d_out = w_q.shape[0]
    xm = x.reshape(bs * m, d_in, d_in)
    Q = jnp.einsum("oi,nij,pj->nop", w_q, xm, w_q)
    K = jnp.einsum("oi,nij,pj->nop", w_k, xm, w_k)
    V = jnp.einsum("oi,nij,pj->nop", w_v, xm, w_v)
    logQ = sym_log(Q).reshape(bs, m, -1)
    logK = sym_log(K).reshape(bs, m, -1)
    logV = sym_log(V).reshape(bs, m, -1)
    diff = logQ[:, :, None, :] - logK[:, None, :, :]
    energy = jnp.sum(diff * diff, axis=-1)               # [b, query, key]
    score = 1.0 / (1.0 + jnp.log1p(energy))
    prob = jax.nn.softmax(score, axis=-1)
    out_log = jnp.einsum("bji,bid->bjd", prob, logV).reshape(bs, m, d_out, d_out)
    return sym_exp(out_log).reshape(-1, d_out, d_out)


if __name__ == "__main__":
    key = jax.random.PRNGKey(0)
    k_x, k_w = jax.random.split(key)

    bs, m, d_in, d_out = 2, 8, 16, 8
    dd = d_out * d_out

    # Deterministic SPD inputs: x = A A^T + eps * I
    a = jax.random.normal(k_x, (bs, m, d_in, d_in), jnp.float32)
    x = jnp.einsum("bmik,bmjk->bmij", a, a) + 1e-2 * jnp.eye(d_in, dtype=jnp.float32)

    model = AttentionManifoldPallas(d_in, d_out, k_w)

    # Sanity-check the fused kron-bilinear kernel against a plain einsum.
    xmat = x.reshape(bs * m, d_in, d_in)
    qkv_chk = qkv_transform(xmat.reshape(bs * m, d_in * d_in).astype(model.qkv_dtype),
                            model.w_qkv_t, out_cols=3 * dd)
    qkv_chk = qkv_chk.reshape(bs * m, 3, d_out, d_out)
    q_direct = jnp.einsum("oi,nij,pj->nop", model.w_q, xmat, model.w_q)
    assert bool(jnp.allclose(qkv_chk[:, 0], q_direct, rtol=1e-3, atol=1e-2))

    out, out_shape = model(x)
    out = jax.block_until_ready(out)

    assert out.shape == (bs * m, d_out, d_out)
    assert out_shape == [bs, m, -1]
    assert bool(jnp.all(jnp.isfinite(out)))

    # End-to-end check against the pure-JAX reference (bf16 attention path).
    ref = _reference_forward(x, model.w_q, model.w_k, model.w_v)
    rel_err = float(jnp.linalg.norm(out - ref) / (jnp.linalg.norm(ref) + 1e-6))
    assert rel_err < 5e-2, rel_err

    print("KERNEL_OK")
</pallas_src>

<mosaic_0001>
module attributes {stable_mosaic.version = 11 : i64} {
  func.func @_qkv_kernel(%arg0: i32, %arg1: memref<16x256xf32, #tpu.memory_space<vmem>>, %arg2: memref<256x256xf32, #tpu.memory_space<vmem>>, %arg3: memref<16x256xf32, #tpu.memory_space<vmem>>) attributes {dimension_semantics = [#tpu.dimension_semantics<parallel>], iteration_bounds = array<i64: 1>, scalar_prefetch = 0 : i64, scratch_operands = 0 : i64, tpu.core_type = #tpu.core_type<tc>, window_params = [{transform_indices = @transform_0, window_bounds = array<i64: 16, 256>}, {pipeline_mode = #tpu.pipeline_mode<synchronous>, transform_indices = @transform_1, window_bounds = array<i64: 256, 256>}, {transform_indices = @transform_2, window_bounds = array<i64: 16, 256>}]} {
    %c0 = arith.constant 0 : index
    %c0_0 = arith.constant 0 : index
    %0 = vector.load %arg1[%c0, %c0_0] : memref<16x256xf32, #tpu.memory_space<vmem>>, vector<16x256xf32>
    %c0_1 = arith.constant 0 : index
    %c0_2 = arith.constant 0 : index
    %1 = vector.load %arg2[%c0_1, %c0_2] : memref<256x256xf32, #tpu.memory_space<vmem>>, vector<256x256xf32>
    %cst = arith.constant dense<0.000000e+00> : vector<16x256xf32>
    %2 = tpu.matmul %0, %1, %cst {dimension_numbers = #tpu.dot_dimension_numbers<[1], [0], [0], [1], [0, 0, 1, 1], [], []>} : vector<16x256xf32>, vector<256x256xf32>, vector<16x256xf32> -> vector<16x256xf32>
    %c0_3 = arith.constant 0 : index
    %c0_4 = arith.constant 0 : index
    %3 = vector.load %arg3[%c0_3, %c0_4] : memref<16x256xf32, #tpu.memory_space<vmem>>, vector<16x256xf32>
    tpu.vector_store %arg3[%c0_3, %c0_4], %2 {strides = array<i32>} : memref<16x256xf32, #tpu.memory_space<vmem>>, vector<16x256xf32>,
    return
  }
  func.func @transform_0(%arg0: i32) -> (i32, i32) {
    %c0_i32 = arith.constant 0 : i32
    %c0_i32_0 = arith.constant 0 : i32
    return %arg0, %c0_i32 : i32, i32
  }
  func.func @transform_1(%arg0: i32) -> (i32, i32) {
    %c0_i32 = arith.constant 0 : i32
    %c0_i32_0 = arith.constant 0 : i32
    %c0_i32_1 = arith.constant 0 : i32
    return %c0_i32, %c0_i32_0 : i32, i32
  }
  func.func @transform_2(%arg0: i32) -> (i32, i32) {
    %c0_i32 = arith.constant 0 : i32
    %c0_i32_0 = arith.constant 0 : i32
    return %arg0, %c0_i32 : i32, i32
  }
}

module attributes {stable_mosaic.version = 11 : i64} {
  func.func @_qkv_kernel(%arg0: i32, %arg1: memref<16x256xf32, #tpu.memory_space<vmem>>, %arg2: memref<256x256xf32, #tpu.memory_space<vmem>>, %arg3: memref<16x256xf32, #tpu.memory_space<vmem>>) attributes {dimension_semantics = [#tpu.dimension_semantics<parallel>], iteration_bounds = array<i64: 1>, scalar_prefetch = 0 : i64, scratch_operands = 0 : i64, tpu.core_type = #tpu.core_type<tc>, window_params = [{transform_indices = @transform_0, window_bounds = array<i64: 16, 256>}, {pipeline_mode = #tpu.pipeline_mode<synchronous>, transform_indices = @transform_1, window_bounds = array<i64: 256, 256>}, {transform_indices = @transform_2, window_bounds = array<i64: 16, 256>}]} {
    %c0 = arith.constant 0 : index
    %c0_0 = arith.constant 0 : index
    %0 = vector.load %arg1[%c0, %c0_0] : memref<16x256xf32, #tpu.memory_space<vmem>>, vector<16x256xf32>
    %c0_1 = arith.constant 0 : index
    %c0_2 = arith.constant 0 : index
    %1 = vector.load %arg2[%c0_1, %c0_2] : memref<256x256xf32, #tpu.memory_space<vmem>>, vector<256x256xf32>
    %cst = arith.constant dense<0.000000e+00> : vector<16x256xf32>
    %2 = tpu.matmul %0, %1, %cst {dimension_numbers = #tpu.dot_dimension_numbers<[1], [0], [0], [1], [0, 0, 1, 1], [], []>} : vector<16x256xf32>, vector<256x256xf32>, vector<16x256xf32> -> vector<16x256xf32>
    %c0_3 = arith.constant 0 : index
    %c0_4 = arith.constant 0 : index
    %3 = vector.load %arg3[%c0_3, %c0_4] : memref<16x256xf32, #tpu.memory_space<vmem>>, vector<16x256xf32>
    tpu.vector_store %arg3[%c0_3, %c0_4], %2 {strides = array<i32>} : memref<16x256xf32, #tpu.memory_space<vmem>>, vector<16x256xf32>,
    return
  }
  func.func @transform_0(%arg0: i32) -> (i32, i32) {
    %c0_i32 = arith.constant 0 : i32
    %c0_i32_0 = arith.constant 0 : i32
    return %arg0, %c0_i32 : i32, i32
  }
  func.func @transform_1(%arg0: i32) -> (i32, i32) {
    %c0_i32 = arith.constant 0 : i32
    %c0_i32_0 = arith.constant 0 : i32
    %c0_i32_1 = arith.constant 0 : i32
    return %c0_i32, %c0_i32_0 : i32, i32
  }
  func.func @transform_2(%arg0: i32) -> (i32, i32) {
    %c0_i32 = arith.constant 0 : i32
    %c0_i32_0 = arith.constant 0 : i32
    return %arg0, %c0_i32 : i32, i32
  }
}

</mosaic_0001>

<llo_original>
// kernel: tpu_custom_call.1
$region0: #{tpu_custom_call.1}
  #allocation0 [shape = 'u32[]', space=smem, size = 0x4, offset = 0x4, fixed_abs, tag = 'smem constant byte address 0x4 - core index']
  #allocation1 [shape = 'u32[144,128]{1,0:T(1,128)}', space=vmem, size = 0x12000, scoped, tag = 'internal scratch']
  %s0 = inlined_call_operand.hbm [shape: f32[16,256], index: 0, kind: input, shape index: {}]
  %s1 = inlined_call_operand.hbm [shape: f32[256,256], index: 1, kind: input, shape index: {}]
  %s2 = inlined_call_operand.hbm [shape: f32[16,256], index: 2, kind: output, shape index: {}]
  %s3 = sld [smem:[#allocation0]]
  $region26: #{tpu_custom_call.1} parent=0
    _
  %s5 = ssub.s32 1, %s3
  %s6 = scalar_select 0, %s5, %s3
  $region1: #{tpu_custom_call.1} parent=0
    #allocation2 [shape = 'u8[16384]{0}', space=vmem, size = 0x4000, scoped, tag = 'input window, operand 0, single buffered']
    #allocation3 [shape = 's32[1]{0}', space=sflag, size = 0x4, scoped, tag = 'scoped memory for tpu_custom_call.1']
    #allocation4 [shape = 's32[1]{0}', space=sflag, size = 0x4, scoped, tag = 'scoped memory for tpu_custom_call.1']
    #allocation5 [shape = 'u8[262144]{0}', space=vmem, size = 0x40000, scoped, tag = 'input window, operand 1, single buffered']
    #allocation6 [shape = 's32[1]{0}', space=sflag, size = 0x4, scoped, tag = 'scoped memory for tpu_custom_call.1']
    #allocation7 [shape = 'u8[16384]{0}', space=vmem, size = 0x4000, scoped, tag = 'output window, operand 0, single buffered']
    %7 = vsyncpa [#allocation3], 0
    %8 = vsyncpa [#allocation6], 0
    %9 = vsyncpa [#allocation4], 0
    // Predicated region
    $region2: #{tpu_custom_call.1} parent=1 // pred_check
      _
    $region3: #{tpu_custom_call.1} parent=1 // pred_check_branch
      %11 = sbr.rel (0) target = $region5
    $region4: #{tpu_custom_call.1} parent=1 // pred_region
      %s13 = ssub.s32 512, 512
      %14 = vsyncadd [#allocation3], %s13
      %s15 = sshll.u32 [#allocation2], 4
      %s16 = int_to_ptr.vmem [resolvable:$true] %s15
      %21 = dma.hbm_to_vmem [thread:$0]  %s0, 512, %s16, [#allocation3], 256, 256, 16
    $region5: #{tpu_custom_call.1} parent=1 // pred_fallthru
      _
    // Predicated region
    $region6: #{tpu_custom_call.1} parent=1 // pred_check
      _
    $region7: #{tpu_custom_call.1} parent=1 // pred_check_branch
      %23 = sbr.rel (0) target = $region9
    $region8: #{tpu_custom_call.1} parent=1 // pred_region
      %s25 = ssub.s32 8192, 8192
      %26 = vsyncadd [#allocation6], %s25
      %s27 = sshll.u32 [#allocation5], 4
      %s28 = int_to_ptr.vmem [resolvable:$true] %s27
      %33 = dma.hbm_to_vmem [thread:$0]  %s1, 8192, %s28, [#allocation6], 256, 256, 16
    $region9: #{tpu_custom_call.1} parent=1 // pred_fallthru
      _
    // Predicated region
    $region10: #{tpu_custom_call.1} parent=1 // pred_check
      _
    $region11: #{tpu_custom_call.1} parent=1 // pred_check_branch
      %35 = sbr.rel (0) target = $region13
    $region12: #{tpu_custom_call.1} parent=1 // pred_region
      %36 = dma.done [#allocation3], 512
    $region13: #{tpu_custom_call.1} parent=1 // pred_fallthru
      _
    // Predicated region
    $region14: #{tpu_custom_call.1} parent=1 // pred_check
      _
    $region15: #{tpu_custom_call.1} parent=1 // pred_check_branch
      %38 = sbr.rel (0) target = $region17
    $region16: #{tpu_custom_call.1} parent=1 // pred_region
      %39 = dma.done [#allocation6], 8192
    $region17: #{tpu_custom_call.1} parent=1 // pred_fallthru
      _
    %v40 = vld [vmem:[#allocation2] sm:$0xff]
    %v41 = vld [vmem:[#allocation2 + $0x8] sm:$0xff]
    %v42 = vld [vmem:[#allocation2 + $0x10] sm:$0xff]
    %v43 = vld [vmem:[#allocation2 + $0x18] sm:$0xff]
    %v44 = vld [vmem:[#allocation5] sm:$0xff]
    %v45 = vld [vmem:[#allocation5 + $0x8] sm:$0xff]
    %v46 = vld [vmem:[#allocation5 + $0x10] sm:$0xff]
    %v47 = vld [vmem:[#allocation5 + $0x18] sm:$0xff]
    %v48 = vld [vmem:[#allocation5 + $0x20] sm:$0xff]
    %v49 = vld [vmem:[#allocation5 + $0x28] sm:$0xff]
    %v50 = vld [vmem:[#allocation5 + $0x30] sm:$0xff]
    %v51 = vld [vmem:[#allocation5 + $0x38] sm:$0xff]
    %v52 = vld [vmem:[#allocation5 + $0x40] sm:$0xff]
    %v53 = vld [vmem:[#allocation5 + $0x48] sm:$0xff]
    %v54 = vld [vmem:[#allocation5 + $0x50] sm:$0xff]
    %v55 = vld [vmem:[#allocation5 + $0x58] sm:$0xff]
    %v56 = vld [vmem:[#allocation5 + $0x60] sm:$0xff]
    %v57 = vld [vmem:[#allocation5 + $0x68] sm:$0xff]
    %v58 = vld [vmem:[#allocation5 + $0x70] sm:$0xff]
    %v59 = vld [vmem:[#allocation5 + $0x78] sm:$0xff]
    %v60 = vld [vmem:[#allocation5 + $0x80] sm:$0xff]
    %v61 = vld [vmem:[#allocation5 + $0x88] sm:$0xff]
    %v62 = vld [vmem:[#allocation5 + $0x90] sm:$0xff]
    %v63 = vld [vmem:[#allocation5 + $0x98] sm:$0xff]
    %v64 = vld [vmem:[#allocation5 + $0xa0] sm:$0xff]
    %v65 = vld [vmem:[#allocation5 + $0xa8] sm:$0xff]
    %v66 = vld [vmem:[#allocation5 + $0xb0] sm:$0xff]
    %v67 = vld [vmem:[#allocation5 + $0xb8] sm:$0xff]
    %v68 = vld [vmem:[#allocation5 + $0xc0] sm:$0xff]
    %v69 = vld [vmem:[#allocation5 + $0xc8] sm:$0xff]
    %v70 = vld [vmem:[#allocation5 + $0xd0] sm:$0xff]
    %v71 = vld [vmem:[#allocation5 + $0xd8] sm:$0xff]
    %v72 = vld [vmem:[#allocation5 + $0xe0] sm:$0xff]
    %v73 = vld [vmem:[#allocation5 + $0xe8] sm:$0xff]
    %v74 = vld [vmem:[#allocation5 + $0xf0] sm:$0xff]
    %v75 = vld [vmem:[#allocation5 + $0xf8] sm:$0xff]
    %v76 = vld [vmem:[#allocation5 + $0x100] sm:$0xff]
    %v77 = vld [vmem:[#allocation5 + $0x108] sm:$0xff]
    %v78 = vld [vmem:[#allocation5 + $0x110] sm:$0xff]
    %v79 = vld [vmem:[#allocation5 + $0x118] sm:$0xff]
    %v80 = vld [vmem:[#allocation5 + $0x120] sm:$0xff]
    %v81 = vld [vmem:[#allocation5 + $0x128] sm:$0xff]
    %v82 = vld [vmem:[#allocation5 + $0x130] sm:$0xff]
    %v83 = vld [vmem:[#allocation5 + $0x138] sm:$0xff]
    %v84 = vld [vmem:[#allocation5 + $0x140] sm:$0xff]
    %v85 = vld [vmem:[#allocation5 + $0x148] sm:$0xff]
    %v86 = vld [vmem:[#allocation5 + $0x150] sm:$0xff]
    %v87 = vld [vmem:[#allocation5 + $0x158] sm:$0xff]
    %v88 = vld [vmem:[#allocation5 + $0x160] sm:$0xff]
    %v89 = vld [vmem:[#allocation5 + $0x168] sm:$0xff]
    %v90 = vld [vmem:[#allocation5 + $0x170] sm:$0xff]
    %v91 = vld [vmem:[#allocation5 + $0x178] sm:$0xff]
    %v92 = vld [vmem:[#allocation5 + $0x180] sm:$0xff]
    %v93 = vld [vmem:[#allocation5 + $0x188] sm:$0xff]
    %v94 = vld [vmem:[#allocation5 + $0x190] sm:$0xff]
    %v95 = vld [vmem:[#allocation5 + $0x198] sm:$0xff]
    %v96 = vld [vmem:[#allocation5 + $0x1a0] sm:$0xff]
    %v97 = vld [vmem:[#allocation5 + $0x1a8] sm:$0xff]
    %v98 = vld [vmem:[#allocation5 + $0x1b0] sm:$0xff]
    %v99 = vld [vmem:[#allocation5 + $0x1b8] sm:$0xff]
    %v100 = vld [vmem:[#allocation5 + $0x1c0] sm:$0xff]
    %v101 = vld [vmem:[#allocation5 + $0x1c8] sm:$0xff]
    %v102 = vld [vmem:[#allocation5 + $0x1d0] sm:$0xff]
    %v103 = vld [vmem:[#allocation5 + $0x1d8] sm:$0xff]
    %v104 = vld [vmem:[#allocation5 + $0x1e0] sm:$0xff]
    %v105 = vld [vmem:[#allocation5 + $0x1e8] sm:$0xff]
    %v106 = vld [vmem:[#allocation5 + $0x1f0] sm:$0xff]
    %v107 = vld [vmem:[#allocation5 + $0x1f8] sm:$0xff]
    %108 = vmatprep.subr.mxu0 %v75
    %109 = vmatpush1.msra.mxu0 %v74
    %110 = vmatprep.subr.mxu0 %v73
    %111 = vmatpush1.msra.mxu0 %v72
    %112 = vmatprep.subr.mxu0 %v71
    %113 = vmatpush1.msra.mxu0 %v70
    %114 = vmatprep.subr.mxu0 %v69
    %115 = vmatpush1.msra.mxu0 %v68
    %116 = vmatprep.subr.mxu0 %v67
    %117 = vmatpush1.msra.mxu0 %v66
    %118 = vmatprep.subr.mxu0 %v65
    %119 = vmatpush1.msra.mxu0 %v64
    %120 = vmatprep.subr.mxu0 %v63
    %121 = vmatpush1.msra.mxu0 %v62
    %122 = vmatprep.subr.mxu0 %v61
    %123 = vmatpush1.msra.mxu0 %v60
    %124 = vmatprep.subr.mxu0 %v59
    %125 = vmatpush1.msra.mxu0 %v58
    %126 = vmatprep.subr.mxu0 %v57
    %127 = vmatpush1.msra.mxu0 %v56
    %128 = vmatprep.subr.mxu0 %v55
    %129 = vmatpush1.msra.mxu0 %v54
    %130 = vmatprep.subr.mxu0 %v53
    %131 = vmatpush1.msra.mxu0 %v52
    %132 = vmatprep.subr.mxu0 %v51
    %133 = vmatpush1.msra.mxu0 %v50
    %134 = vmatprep.subr.mxu0 %v49
    %135 = vmatpush1.msra.mxu0 %v48
    %136 = vmatprep.subr.mxu0 %v47
    %137 = vmatpush1.msra.mxu0 %v46
    %138 = vmatprep.subr.mxu0 %v45
    %139 = vmatpush1.msra.mxu0 %v44
    %140 = vmatprep.subr.mxu0 %v107
    %141 = vmatpush2.msra.mxu0 %v106
    %142 = vmatprep.subr.mxu0 %v105
    %143 = vmatpush2.msra.mxu0 %v104
    %144 = vmatprep.subr.mxu0 %v103
    %145 = vmatpush2.msra.mxu0 %v102
    %146 = vmatprep.subr.mxu0 %v101
    %147 = vmatpush2.msra.mxu0 %v100
    %148 = vmatprep.subr.mxu0 %v99
    %149 = vmatpush2.msra.mxu0 %v98
    %150 = vmatprep.subr.mxu0 %v97
    %151 = vmatpush2.msra.mxu0 %v96
    %152 = vmatprep.subr.mxu0 %v95
    %153 = vmatpush2.msra.mxu0 %v94
    %154 = vmatprep.subr.mxu0 %v93
    %155 = vmatpush2.msra.mxu0 %v92
    %156 = vmatprep.subr.mxu0 %v91
    %157 = vmatpush2.msra.mxu0 %v90
    %158 = vmatprep.subr.mxu0 %v89
    %159 = vmatpush2.msra.mxu0 %v88
    %160 = vmatprep.subr.mxu0 %v87
    %161 = vmatpush2.msra.mxu0 %v86
    %162 = vmatprep.subr.mxu0 %v85
    %163 = vmatpush2.msra.mxu0 %v84
    %164 = vmatprep.subr.mxu0 %v83
    %165 = vmatpush2.msra.mxu0 %v82
    %166 = vmatprep.subr.mxu0 %v81
    %167 = vmatpush2.msra.mxu0 %v80
    %168 = vmatprep.subr.mxu0 %v79
    %169 = vmatpush2.msra.mxu0 %v78
    %170 = vmatprep.subr.mxu0 %v77
    %171 = vmatpush2.msra.mxu0 %v76
    %172 = vmatprep.mubr.f32.mxu0 %v41
    %173 = vmatmul.mubr.f32.gmra.mxu0 %v40
    %v174 = vpop.f32.mrf.mxu0
    %v175 = vadd.f32 0.0, %v174
    %v176 = vpop.f32.mrf.mxu0
    %v177 = vadd.f32 0.0, %v176
    %178 = vmatprep.mubr.f32.mxu0 %v43
    %179 = vmatmul.mubr.f32.gmra.mxu0 %v42
    %v180 = vpop.f32.mrf.mxu0
    %v181 = vadd.f32 0.0, %v180
    %v182 = vpop.f32.mrf.mxu0
    %v183 = vadd.f32 0.0, %v182
    %184 = vdwg.mxu0
    %185 = vst [vmem:[#allocation7] sm:$0xff] %v175
    %186 = vst [vmem:[#allocation7 + $0x8] sm:$0xff] %v177
    %187 = vst [vmem:[#allocation7 + $0x10] sm:$0xff] %v181
    %188 = vst [vmem:[#allocation7 + $0x18] sm:$0xff] %v183
    // Predicated region
    $region18: #{tpu_custom_call.1} parent=1 // pred_check
      _
    $region19: #{tpu_custom_call.1} parent=1 // pred_check_branch
      %190 = sbr.rel (0) target = $region21
    $region20: #{tpu_custom_call.1} parent=1 // pred_region
      %s192 = ssub.s32 512, 512
      %193 = vsyncadd [#allocation4], %s192
      %s194 = sshll.u32 [#allocation7], 4
      %s195 = int_to_ptr.vmem [resolvable:$true] %s194
      %200 = dma.vmem_to_hbm [thread:$0]  %s195, 512, %s2, [#allocation4], 256, 256, 16
    $region21: #{tpu_custom_call.1} parent=1 // pred_fallthru
      _
    // Predicated region
    $region22: #{tpu_custom_call.1} parent=1 // pred_check
      _
    $region23: #{tpu_custom_call.1} parent=1 // pred_check_branch
      %202 = sbr.rel (0) target = $region25
    $region24: #{tpu_custom_call.1} parent=1 // pred_region
      %203 = dma.done [#allocation4], 512
    $region25: #{tpu_custom_call.1} parent=1 // pred_fallthru
      _
    %204 = vsyncpa [#allocation3], 1
    %205 = vsyncpa [#allocation6], 1
    %206 = vsyncpa [#allocation4], 1

// kernel: tpu_custom_call.1
$region0: #{tpu_custom_call.1}
  #allocation0 [shape = 'u32[]', space=smem, size = 0x4, offset = 0x4, fixed_abs, tag = 'smem constant byte address 0x4 - core index']
  #allocation1 [shape = 'u32[144,128]{1,0:T(1,128)}', space=vmem, size = 0x12000, scoped, tag = 'internal scratch']
  %s0 = inlined_call_operand.hbm [shape: f32[16,256], index: 0, kind: input, shape index: {}]
  %s1 = inlined_call_operand.hbm [shape: f32[256,256], index: 1, kind: input, shape index: {}]
  %s2 = inlined_call_operand.hbm [shape: f32[16,256], index: 2, kind: output, shape index: {}]
  %s3 = sld [smem:[#allocation0]]
  $region26: #{tpu_custom_call.1} parent=0
    _
  %s5 = ssub.s32 1, %s3
  %s6 = scalar_select 0, %s5, %s3
  $region1: #{tpu_custom_call.1} parent=0
    #allocation2 [shape = 'u8[16384]{0}', space=vmem, size = 0x4000, scoped, tag = 'input window, operand 0, single buffered']
    #allocation3 [shape = 's32[1]{0}', space=sflag, size = 0x4, scoped, tag = 'scoped memory for tpu_custom_call.1']
    #allocation4 [shape = 's32[1]{0}', space=sflag, size = 0x4, scoped, tag = 'scoped memory for tpu_custom_call.1']
    #allocation5 [shape = 'u8[262144]{0}', space=vmem, size = 0x40000, scoped, tag = 'input window, operand 1, single buffered']
    #allocation6 [shape = 's32[1]{0}', space=sflag, size = 0x4, scoped, tag = 'scoped memory for tpu_custom_call.1']
    #allocation7 [shape = 'u8[16384]{0}', space=vmem, size = 0x4000, scoped, tag = 'output window, operand 0, single buffered']
    %7 = vsyncpa [#allocation3], 0
    %8 = vsyncpa [#allocation6], 0
    %9 = vsyncpa [#allocation4], 0
    // Predicated region
    $region2: #{tpu_custom_call.1} parent=1 // pred_check
      _
    $region3: #{tpu_custom_call.1} parent=1 // pred_check_branch
      %11 = sbr.rel (0) target = $region5
    $region4: #{tpu_custom_call.1} parent=1 // pred_region
      %s13 = ssub.s32 512, 512
      %14 = vsyncadd [#allocation3], %s13
      %s15 = sshll.u32 [#allocation2], 4
      %s16 = int_to_ptr.vmem [resolvable:$true] %s15
      %21 = dma.hbm_to_vmem [thread:$0]  %s0, 512, %s16, [#allocation3], 256, 256, 16
    $region5: #{tpu_custom_call.1} parent=1 // pred_fallthru
      _
    // Predicated region
    $region6: #{tpu_custom_call.1} parent=1 // pred_check
      _
    $region7: #{tpu_custom_call.1} parent=1 // pred_check_branch
      %23 = sbr.rel (0) target = $region9
    $region8: #{tpu_custom_call.1} parent=1 // pred_region
      %s25 = ssub.s32 8192, 8192
      %26 = vsyncadd [#allocation6], %s25
      %s27 = sshll.u32 [#allocation5], 4
      %s28 = int_to_ptr.vmem [resolvable:$true] %s27
      %33 = dma.hbm_to_vmem [thread:$0]  %s1, 8192, %s28, [#allocation6], 256, 256, 16
    $region9: #{tpu_custom_call.1} parent=1 // pred_fallthru
      _
    // Predicated region
    $region10: #{tpu_custom_call.1} parent=1 // pred_check
      _
    $region11: #{tpu_custom_call.1} parent=1 // pred_check_branch
      %35 = sbr.rel (0) target = $region13
    $region12: #{tpu_custom_call.1} parent=1 // pred_region
      %36 = dma.done [#allocation3], 512
    $region13: #{tpu_custom_call.1} parent=1 // pred_fallthru
      _
    // Predicated region
    $region14: #{tpu_custom_call.1} parent=1 // pred_check
      _
    $region15: #{tpu_custom_call.1} parent=1 // pred_check_branch
      %38 = sbr.rel (0) target = $region17
    $region16: #{tpu_custom_call.1} parent=1 // pred_region
      %39 = dma.done [#allocation6], 8192
    $region17: #{tpu_custom_call.1} parent=1 // pred_fallthru
      _
    %v40 = vld [vmem:[#allocation2] sm:$0xff]
    %v41 = vld [vmem:[#allocation2 + $0x8] sm:$0xff]
    %v42 = vld [vmem:[#allocation2 + $0x10] sm:$0xff]
    %v43 = vld [vmem:[#allocation2 + $0x18] sm:$0xff]
    %v44 = vld [vmem:[#allocation5] sm:$0xff]
    %v45 = vld [vmem:[#allocation5 + $0x8] sm:$0xff]
    %v46 = vld [vmem:[#allocation5 + $0x10] sm:$0xff]
    %v47 = vld [vmem:[#allocation5 + $0x18] sm:$0xff]
    %v48 = vld [vmem:[#allocation5 + $0x20] sm:$0xff]
    %v49 = vld [vmem:[#allocation5 + $0x28] sm:$0xff]
    %v50 = vld [vmem:[#allocation5 + $0x30] sm:$0xff]
    %v51 = vld [vmem:[#allocation5 + $0x38] sm:$0xff]
    %v52 = vld [vmem:[#allocation5 + $0x40] sm:$0xff]
    %v53 = vld [vmem:[#allocation5 + $0x48] sm:$0xff]
    %v54 = vld [vmem:[#allocation5 + $0x50] sm:$0xff]
    %v55 = vld [vmem:[#allocation5 + $0x58] sm:$0xff]
    %v56 = vld [vmem:[#allocation5 + $0x60] sm:$0xff]
    %v57 = vld [vmem:[#allocation5 + $0x68] sm:$0xff]
    %v58 = vld [vmem:[#allocation5 + $0x70] sm:$0xff]
    %v59 = vld [vmem:[#allocation5 + $0x78] sm:$0xff]
    %v60 = vld [vmem:[#allocation5 + $0x80] sm:$0xff]
    %v61 = vld [vmem:[#allocation5 + $0x88] sm:$0xff]
    %v62 = vld [vmem:[#allocation5 + $0x90] sm:$0xff]
    %v63 = vld [vmem:[#allocation5 + $0x98] sm:$0xff]
    %v64 = vld [vmem:[#allocation5 + $0xa0] sm:$0xff]
    %v65 = vld [vmem:[#allocation5 + $0xa8] sm:$0xff]
    %v66 = vld [vmem:[#allocation5 + $0xb0] sm:$0xff]
    %v67 = vld [vmem:[#allocation5 + $0xb8] sm:$0xff]
    %v68 = vld [vmem:[#allocation5 + $0xc0] sm:$0xff]
    %v69 = vld [vmem:[#allocation5 + $0xc8] sm:$0xff]
    %v70 = vld [vmem:[#allocation5 + $0xd0] sm:$0xff]
    %v71 = vld [vmem:[#allocation5 + $0xd8] sm:$0xff]
    %v72 = vld [vmem:[#allocation5 + $0xe0] sm:$0xff]
    %v73 = vld [vmem:[#allocation5 + $0xe8] sm:$0xff]
    %v74 = vld [vmem:[#allocation5 + $0xf0] sm:$0xff]
    %v75 = vld [vmem:[#allocation5 + $0xf8] sm:$0xff]
    %v76 = vld [vmem:[#allocation5 + $0x100] sm:$0xff]
    %v77 = vld [vmem:[#allocation5 + $0x108] sm:$0xff]
    %v78 = vld [vmem:[#allocation5 + $0x110] sm:$0xff]
    %v79 = vld [vmem:[#allocation5 + $0x118] sm:$0xff]
    %v80 = vld [vmem:[#allocation5 + $0x120] sm:$0xff]
    %v81 = vld [vmem:[#allocation5 + $0x128] sm:$0xff]
    %v82 = vld [vmem:[#allocation5 + $0x130] sm:$0xff]
    %v83 = vld [vmem:[#allocation5 + $0x138] sm:$0xff]
    %v84 = vld [vmem:[#allocation5 + $0x140] sm:$0xff]
    %v85 = vld [vmem:[#allocation5 + $0x148] sm:$0xff]
    %v86 = vld [vmem:[#allocation5 + $0x150] sm:$0xff]
    %v87 = vld [vmem:[#allocation5 + $0x158] sm:$0xff]
    %v88 = vld [vmem:[#allocation5 + $0x160] sm:$0xff]
    %v89 = vld [vmem:[#allocation5 + $0x168] sm:$0xff]
    %v90 = vld [vmem:[#allocation5 + $0x170] sm:$0xff]
    %v91 = vld [vmem:[#allocation5 + $0x178] sm:$0xff]
    %v92 = vld [vmem:[#allocation5 + $0x180] sm:$0xff]
    %v93 = vld [vmem:[#allocation5 + $0x188] sm:$0xff]
    %v94 = vld [vmem:[#allocation5 + $0x190] sm:$0xff]
    %v95 = vld [vmem:[#allocation5 + $0x198] sm:$0xff]
    %v96 = vld [vmem:[#allocation5 + $0x1a0] sm:$0xff]
    %v97 = vld [vmem:[#allocation5 + $0x1a8] sm:$0xff]
    %v98 = vld [vmem:[#allocation5 + $0x1b0] sm:$0xff]
    %v99 = vld [vmem:[#allocation5 + $0x1b8] sm:$0xff]
    %v100 = vld [vmem:[#allocation5 + $0x1c0] sm:$0xff]
    %v101 = vld [vmem:[#allocation5 + $0x1c8] sm:$0xff]
    %v102 = vld [vmem:[#allocation5 + $0x1d0] sm:$0xff]
    %v103 = vld [vmem:[#allocation5 + $0x1d8] sm:$0xff]
    %v104 = vld [vmem:[#allocation5 + $0x1e0] sm:$0xff]
    %v105 = vld [vmem:[#allocation5 + $0x1e8] sm:$0xff]
    %v106 = vld [vmem:[#allocation5 + $0x1f0] sm:$0xff]
    %v107 = vld [vmem:[#allocation5 + $0x1f8] sm:$0xff]
    %108 = vmatprep.subr.mxu0 %v75
    %109 = vmatpush1.msra.mxu0 %v74
    %110 = vmatprep.subr.mxu0 %v73
    %111 = vmatpush1.msra.mxu0 %v72
    %112 = vmatprep.subr.mxu0 %v71
    %113 = vmatpush1.msra.mxu0 %v70
    %114 = vmatprep.subr.mxu0 %v69
    %115 = vmatpush1.msra.mxu0 %v68
    %116 = vmatprep.subr.mxu0 %v67
    %117 = vmatpush1.msra.mxu0 %v66
    %118 = vmatprep.subr.mxu0 %v65
    %119 = vmatpush1.msra.mxu0 %v64
    %120 = vmatprep.subr.mxu0 %v63
    %121 = vmatpush1.msra.mxu0 %v62
    %122 = vmatprep.subr.mxu0 %v61
    %123 = vmatpush1.msra.mxu0 %v60
    %124 = vmatprep.subr.mxu0 %v59
    %125 = vmatpush1.msra.mxu0 %v58
    %126 = vmatprep.subr.mxu0 %v57
    %127 = vmatpush1.msra.mxu0 %v56
    %128 = vmatprep.subr.mxu0 %v55
    %129 = vmatpush1.msra.mxu0 %v54
    %130 = vmatprep.subr.mxu0 %v53
    %131 = vmatpush1.msra.mxu0 %v52
    %132 = vmatprep.subr.mxu0 %v51
    %133 = vmatpush1.msra.mxu0 %v50
    %134 = vmatprep.subr.mxu0 %v49
    %135 = vmatpush1.msra.mxu0 %v48
    %136 = vmatprep.subr.mxu0 %v47
    %137 = vmatpush1.msra.mxu0 %v46
    %138 = vmatprep.subr.mxu0 %v45
    %139 = vmatpush1.msra.mxu0 %v44
    %140 = vmatprep.subr.mxu0 %v107
    %141 = vmatpush2.msra.mxu0 %v106
    %142 = vmatprep.subr.mxu0 %v105
    %143 = vmatpush2.msra.mxu0 %v104
    %144 = vmatprep.subr.mxu0 %v103
    %145 = vmatpush2.msra.mxu0 %v102
    %146 = vmatprep.subr.mxu0 %v101
    %147 = vmatpush2.msra.mxu0 %v100
    %148 = vmatprep.subr.mxu0 %v99
    %149 = vmatpush2.msra.mxu0 %v98
    %150 = vmatprep.subr.mxu0 %v97
    %151 = vmatpush2.msra.mxu0 %v96
    %152 = vmatprep.subr.mxu0 %v95
    %153 = vmatpush2.msra.mxu0 %v94
    %154 = vmatprep.subr.mxu0 %v93
    %155 = vmatpush2.msra.mxu0 %v92
    %156 = vmatprep.subr.mxu0 %v91
    %157 = vmatpush2.msra.mxu0 %v90
    %158 = vmatprep.subr.mxu0 %v89
    %159 = vmatpush2.msra.mxu0 %v88
    %160 = vmatprep.subr.mxu0 %v87
    %161 = vmatpush2.msra.mxu0 %v86
    %162 = vmatprep.subr.mxu0 %v85
    %163 = vmatpush2.msra.mxu0 %v84
    %164 = vmatprep.subr.mxu0 %v83
    %165 = vmatpush2.msra.mxu0 %v82
    %166 = vmatprep.subr.mxu0 %v81
    %167 = vmatpush2.msra.mxu0 %v80
    %168 = vmatprep.subr.mxu0 %v79
    %169 = vmatpush2.msra.mxu0 %v78
    %170 = vmatprep.subr.mxu0 %v77
    %171 = vmatpush2.msra.mxu0 %v76
    %172 = vmatprep.mubr.f32.mxu0 %v41
    %173 = vmatmul.mubr.f32.gmra.mxu0 %v40
    %v174 = vpop.f32.mrf.mxu0
    %v175 = vadd.f32 0.0, %v174
    %v176 = vpop.f32.mrf.mxu0
    %v177 = vadd.f32 0.0, %v176
    %178 = vmatprep.mubr.f32.mxu0 %v43
    %179 = vmatmul.mubr.f32.gmra.mxu0 %v42
    %v180 = vpop.f32.mrf.mxu0
    %v181 = vadd.f32 0.0, %v180
    %v182 = vpop.f32.mrf.mxu0
    %v183 = vadd.f32 0.0, %v182
    %184 = vdwg.mxu0
    %185 = vst [vmem:[#allocation7] sm:$0xff] %v175
    %186 = vst [vmem:[#allocation7 + $0x8] sm:$0xff] %v177
    %187 = vst [vmem:[#allocation7 + $0x10] sm:$0xff] %v181
    %188 = vst [vmem:[#allocation7 + $0x18] sm:$0xff] %v183
    // Predicated region
    $region18: #{tpu_custom_call.1} parent=1 // pred_check
      _
    $region19: #{tpu_custom_call.1} parent=1 // pred_check_branch
      %190 = sbr.rel (0) target = $region21
    $region20: #{tpu_custom_call.1} parent=1 // pred_region
      %s192 = ssub.s32 512, 512
      %193 = vsyncadd [#allocation4], %s192
      %s194 = sshll.u32 [#allocation7], 4
      %s195 = int_to_ptr.vmem [resolvable:$true] %s194
      %200 = dma.vmem_to_hbm [thread:$0]  %s195, 512, %s2, [#allocation4], 256, 256, 16
    $region21: #{tpu_custom_call.1} parent=1 // pred_fallthru
      _
    // Predicated region
    $region22: #{tpu_custom_call.1} parent=1 // pred_check
      _
    $region23: #{tpu_custom_call.1} parent=1 // pred_check_branch
      %202 = sbr.rel (0) target = $region25
    $region24: #{tpu_custom_call.1} parent=1 // pred_region
      %203 = dma.done [#allocation4], 512
    $region25: #{tpu_custom_call.1} parent=1 // pred_fallthru
      _
    %204 = vsyncpa [#allocation3], 1
    %205 = vsyncpa [#allocation6], 1
    %206 = vsyncpa [#allocation4], 1

</llo_original>
